<compile_context>
chip_gen: v7x
topology: tpu7x:2x2x1
jax: 0.10.0
libtpu: 0.0.40
codegen_flags: <defaults>
</compile_context>

<pallas_src>
import functools

import jax
import jax.numpy as jnp
import numpy as np
from jax import lax
from jax.experimental import pallas as pl
from jax.experimental.pallas import tpu as pltpu

BN_EPS = 1e-5
_LANE = 128


# --------------------------------------------------------------------------
# Planning helpers
# --------------------------------------------------------------------------
def _round_up(x, m):
    return (x + m - 1) // m * m


def _divisors_desc(k):
    ds = set()
    i = 1
    while i * i <= k:
        if k % i == 0:
            ds.add(i)
            ds.add(k // i)
        i += 1
    return sorted(ds, reverse=True)


def _vmem_caps():
    """(pipelined-block budget, scoped-vmem limit) in bytes for this chip."""
    cap = 64 << 20  # assume the smallest per-core VMEM (v7x) if the query fails
    try:
        info = pltpu.get_tpu_info()
        cap = int(getattr(info, "vmem_capacity_bytes", cap)) or cap
    except Exception:
        pass
    budget = min(cap // 2, 56 << 20)        # for the pipelined data blocks
    limit = min(cap - (8 << 20), 112 << 20)  # scoped-VMEM limit with headroom
    return budget, limit


def _plan_tiles(N, C_in, C_out, L_pad, budget):
    """Pick (TN, TL) for the tiled two-pass path from a VMEM byte budget.

    Per-step VMEM (pass 2 dominates):
      x block   : TN*C_in*TL*4   x2 (double buffered)
      out block : TN*C_out*TL*4  x2 (double buffered)
      y interm. : TN*C_out*TL*4  (f32 matmul result before cast/store)
      weight    : C_out*C_in*2   x2 (bf16) + shift
    Pass 1 additionally keeps the (C_in, C_in) Gram block resident.
    """
    fixed = max(2 * C_out * C_in * 2 + 2 * C_out * 4,       # pass 2 constants
                2 * C_in * C_in * 4 + 2 * C_in * 4)         # pass 1 accumulators
    per_col = 4 * (2 * C_in + 3 * C_out)                    # per output column

    k = L_pad // _LANE
    TL = _LANE
    for d in _divisors_desc(k):
        tl = d * _LANE
        if fixed + per_col * tl <= budget:
            TL = tl
            break

    TN = 1
    if TL == L_pad:  # one tile covers all of L -> pack batch rows per step
        for d in _divisors_desc(N):
            if fixed + per_col * TL * d <= budget:
                TN = d
                break
    return TN, TL


# --------------------------------------------------------------------------
# Fused fast path: conv + exact two-pass BN + ReLU in a single kernel
# --------------------------------------------------------------------------
def _fused_kernel(x_ref, w_ref, gamma_ref, beta_ref, o_ref, y_ref,
                  *, n_batch, m_true, l_true):
    # x_ref:     (N, C_in, Lp)   gamma/beta: (C_out, 1)   o_ref/y_ref: (N, C_out, Lp)
    w = w_ref[...]                                   # (C_out, C_in) f32
    c_out, l_pad = y_ref.shape[1], y_ref.shape[2]

    # 1x1 conv into VMEM scratch (MXU).  In-kernel f32 matmul precision is
    # sufficient for BN stats (verified against the f32 reference).
    for n in range(n_batch):
        y_ref[n] = jnp.dot(w, x_ref[n], preferred_element_type=jnp.float32)

    # Training-mode BN statistics over (N, L): exact two-pass mean/variance.
    # Zero-padded columns contribute 0 to the sums (x padded with zeros, no
    # bias); they are masked out of the centered pass.
    sum_y = jnp.zeros((c_out, 1), jnp.float32)
    for n in range(n_batch):
        sum_y = sum_y + jnp.sum(y_ref[n], axis=-1, keepdims=True)
    mean = sum_y * (1.0 / m_true)

    lane_ok = None
    if l_true != l_pad:
        lane_ok = lax.broadcasted_iota(jnp.int32, (c_out, l_pad), 1) < l_true

    ssq = jnp.zeros((c_out, 1), jnp.float32)
    for n in range(n_batch):
        d = y_ref[n] - mean
        if lane_ok is not None:
            d = jnp.where(lane_ok, d, 0.0)
        ssq = ssq + jnp.sum(d * d, axis=-1, keepdims=True)
    var = ssq * (1.0 / m_true)

    scale = gamma_ref[...] * lax.rsqrt(var + BN_EPS)         # (C_out, 1), EUP
    shift = beta_ref[...] - mean * scale                     # (C_out, 1)
    for n in range(n_batch):
        o_ref[n] = jnp.maximum(y_ref[n] * scale + shift, 0.0).astype(o_ref.dtype)


# --------------------------------------------------------------------------
# Tiled path, pass 1: per-core partial colsum / Gram accumulators
# --------------------------------------------------------------------------
def _stats_kernel(x_ref, sum_ref, gram_ref, *, tn, w_half, w_total):
    # x_ref: (TN, C_in, TL);  sum_ref: (1, C_in, 1);  gram_ref: (1, C_in, C_in)
    c = pl.program_id(0)   # core-split index (parallel axis)
    i = pl.program_id(1)   # per-core work step (arbitrary axis)

    @pl.when(i == 0)
    def _():
        sum_ref[...] = jnp.zeros_like(sum_ref)
        gram_ref[...] = jnp.zeros_like(gram_ref)

    # Skip the clamped/duplicated trailing steps of the second core half.
    @pl.when(c * w_half + i < w_total)
    def _():
        s = sum_ref[0]
        g = gram_ref[0]
        for b in range(tn):
            xb = x_ref[b]                                    # (C_in, TL)
            s = s + jnp.sum(xb, axis=-1, keepdims=True)
            g = g + lax.dot_general(
                xb, xb, dimension_numbers=(((1,), (1,)), ((), ())),
                preferred_element_type=jnp.float32)
        sum_ref[0] = s
        gram_ref[0] = g


# --------------------------------------------------------------------------
# Tiled path, pass 2: out = ReLU(W'·x + t)  (bf16 operands, f32 accumulate)
# --------------------------------------------------------------------------
def _matmul_bn_relu_kernel(x_ref, w_ref, t_ref, o_ref, *, tn):
    # x_ref: (TN, C_in, TL);  w_ref: (C_out, C_in) bf16;  t_ref: (C_out, 1) f32
    w = w_ref[...]
    t = t_ref[...]
    for b in range(tn):
        xb = x_ref[b].astype(w.dtype)                        # bf16 cast in-kernel
        y = jnp.dot(w, xb, preferred_element_type=jnp.float32)
        o_ref[b] = jnp.maximum(y + t, 0.0).astype(o_ref.dtype)


# --------------------------------------------------------------------------
# Wrapper
# --------------------------------------------------------------------------
def conv_bn_relu_1d(x_ncl, weight, bias, gamma, beta, *,
                    force_tiled=False, tile_n=None, tile_l=None):
    """ConvBNReLU1D.forward (kernel_size=1, relu, training-mode BatchNorm1d).

    x_ncl:  (N, C_in, L) float32
    weight: (C_out, C_in) or (C_out, C_in, 1) float32
    bias:   (C_out,) float32  (cancels exactly under training-mode BN)
    gamma:  (C_out,) float32  (BatchNorm1d weight)
    beta:   (C_out,) float32  (BatchNorm1d bias)
    returns (N, C_out, L) float32
    """
    if weight.ndim == 3:                 # PyTorch Conv1d weight (C_out, C_in, 1)
        weight = weight[:, :, 0]
    del bias                             # cancels in the BN centering step

    N, C_in, L = x_ncl.shape
    C_out = weight.shape[0]
    M = N * L

    x = x_ncl.astype(jnp.float32)
    w = weight.astype(jnp.float32)
    gamma = gamma.astype(jnp.float32)
    beta = beta.astype(jnp.float32)

    L_pad = _round_up(L, _LANE)
    x_p = jnp.pad(x, ((0, 0), (0, 0), (0, L_pad - L))) if L_pad != L else x

    budget, vmem_limit = _vmem_caps()

    def _cparams(sem):
        return pltpu.CompilerParams(dimension_semantics=sem,
                                    vmem_limit_bytes=vmem_limit)

    # ---------------- fused fast path ----------------
    fast_bytes = 4 * N * L_pad * (2 * C_in + 4 * C_out) + 8 * C_out * C_in
    if not force_tiled and fast_bytes <= budget:
        out_p = pl.pallas_call(
            functools.partial(_fused_kernel, n_batch=N, m_true=float(M), l_true=L),
            out_shape=jax.ShapeDtypeStruct((N, C_out, L_pad), jnp.float32),
            grid=(1,),
            in_specs=[
                pl.BlockSpec((N, C_in, L_pad), lambda i: (0, 0, 0)),
                pl.BlockSpec((C_out, C_in), lambda i: (0, 0)),
                pl.BlockSpec((C_out, 1), lambda i: (0, 0)),
                pl.BlockSpec((C_out, 1), lambda i: (0, 0)),
            ],
            out_specs=pl.BlockSpec((N, C_out, L_pad), lambda i: (0, 0, 0)),
            scratch_shapes=[pltpu.VMEM((N, C_out, L_pad), jnp.float32)],
            compiler_params=_cparams(("arbitrary",)),
        )(x_p, w, gamma.reshape(C_out, 1), beta.reshape(C_out, 1))
        return out_p[:, :, :L] if L_pad != L else out_p

    # ---------------- tiled two-pass path ----------------
    if tile_n is None or tile_l is None:
        TN, TL = _plan_tiles(N, C_in, C_out, L_pad, budget)
    else:
        TN, TL = int(tile_n), int(tile_l)
    assert N % TN == 0 and L_pad % TL == 0 and TL % _LANE == 0

    n_steps = N // TN
    LT = L_pad // TL
    W_total = n_steps * LT
    w_half = -(-W_total // 2)            # per-core share of the flattened work

    def x_stats_map(c, i):
        wk = jnp.minimum(c * w_half + i, W_total - 1)
        return (wk // LT, 0, wk % LT)

    colsum_p, gram_p = pl.pallas_call(
        functools.partial(_stats_kernel, tn=TN, w_half=w_half, w_total=W_total),
        out_shape=(jax.ShapeDtypeStruct((2, C_in, 1), jnp.float32),
                   jax.ShapeDtypeStruct((2, C_in, C_in), jnp.float32)),
        grid=(2, w_half),
        in_specs=[pl.BlockSpec((TN, C_in, TL), x_stats_map)],
        out_specs=(pl.BlockSpec((1, C_in, 1), lambda c, i: (c, 0, 0)),
                   pl.BlockSpec((1, C_in, C_in), lambda c, i: (c, 0, 0))),
        compiler_params=_cparams(("parallel", "arbitrary")),
    )(x_p)

    # Tiny XLA glue: combine per-core partials and fold BN into the weight.
    hi = lax.Precision.HIGHEST
    colsum = jnp.sum(colsum_p, axis=0)                             # (C_in, 1)
    gram = jnp.sum(gram_p, axis=0)                                 # (C_in, C_in)
    mu_x = colsum / M
    mean_y = jnp.matmul(w, mu_x, precision=hi)                     # (C_out, 1)
    cov = gram / M - jnp.matmul(mu_x, mu_x.T, precision=hi)        # (C_in, C_in)
    var_y = jnp.sum(jnp.matmul(w, cov, precision=hi) * w,
                    axis=1, keepdims=True)                         # (C_out, 1)
    var_y = jnp.maximum(var_y, 0.0)                                # Gram rounding guard
    scale = gamma[:, None] * lax.rsqrt(var_y + BN_EPS)
    w_folded = (w * scale).astype(jnp.bfloat16)                    # (C_out, C_in)
    shift = beta[:, None] - mean_y * scale                         # (C_out, 1)

    out_p = pl.pallas_call(
        functools.partial(_matmul_bn_relu_kernel, tn=TN),
        out_shape=jax.ShapeDtypeStruct((N, C_out, L_pad), jnp.float32),
        grid=(n_steps, LT),
        in_specs=[
            pl.BlockSpec((TN, C_in, TL), lambda n, l: (n, 0, l)),
            pl.BlockSpec((C_out, C_in), lambda n, l: (0, 0)),
            pl.BlockSpec((C_out, 1), lambda n, l: (0, 0)),
        ],
        out_specs=pl.BlockSpec((TN, C_out, TL), lambda n, l: (n, 0, l)),
        compiler_params=_cparams(("parallel", "parallel")),
    )(x_p, w_folded, shift)
    return out_p[:, :, :L] if L_pad != L else out_p


# --------------------------------------------------------------------------
# Pure-JAX reference and self-test
# --------------------------------------------------------------------------
def _reference(x_ncl, weight, bias, gamma, beta):
    """Conv1d(k=1) + BatchNorm1d(training) + ReLU, all in f32."""
    y = jnp.einsum("ncl,oc->nol", x_ncl, weight,
                   precision=lax.Precision.HIGHEST) + bias[None, :, None]
    mean = jnp.mean(y, axis=(0, 2), keepdims=True)
    var = jnp.mean((y - mean) ** 2, axis=(0, 2), keepdims=True)
    y = (y - mean) / jnp.sqrt(var + BN_EPS)
    y = y * gamma[None, :, None] + beta[None, :, None]
    return jnp.maximum(y, 0.0)


if __name__ == "__main__":
    key = jax.random.PRNGKey(0)
    k1, k2, k3, k4, k5, k6 = jax.random.split(key, 6)

    C_IN, C_OUT = 16, 32
    weight = 0.1 * jax.random.normal(k2, (C_OUT, C_IN), dtype=jnp.float32)
    bias = 0.1 * jax.random.normal(k3, (C_OUT,), dtype=jnp.float32)
    gamma = 1.0 + 0.1 * jax.random.normal(k4, (C_OUT,), dtype=jnp.float32)
    beta = 0.1 * jax.random.normal(k5, (C_OUT,), dtype=jnp.float32)

    # Case 1: fused fast path (ragged L=200 -> exercises lane padding + mask).
    N1, L1 = 2, 200
    x1 = jax.random.normal(k1, (N1, C_IN, L1), dtype=jnp.float32)
    out1 = jax.block_until_ready(conv_bn_relu_1d(x1, weight, bias, gamma, beta))
    ref1 = _reference(x1, weight, bias, gamma, beta)
    np.testing.assert_allclose(np.asarray(out1), np.asarray(ref1),
                               rtol=2e-3, atol=2e-3)

    # Case 2: tiled two-pass path (forced small tiles -> exercises the
    # per-core Gram stats accumulation, clamped core-split, and the bf16
    # folded-matmul epilogue across a multi-step grid).
    N2, L2 = 3, 384
    x2 = jax.random.normal(k6, (N2, C_IN, L2), dtype=jnp.float32)
    out2 = jax.block_until_ready(
        conv_bn_relu_1d(x2, weight, bias, gamma, beta,
                        force_tiled=True, tile_n=1, tile_l=128))
    ref2 = _reference(x2, weight, bias, gamma, beta)
    np.testing.assert_allclose(np.asarray(out2), np.asarray(ref2),
                               rtol=2e-2, atol=2e-2)

    print("KERNEL_OK")
</pallas_src>

<mosaic_0001>
module attributes {stable_mosaic.version = 11 : i64} {
  func.func @_fused_kernel(%arg0: i32, %arg1: memref<2x16x256xf32, #tpu.memory_space<vmem>>, %arg2: memref<32x16xf32, #tpu.memory_space<vmem>>, %arg3: memref<32x1xf32, #tpu.memory_space<vmem>>, %arg4: memref<32x1xf32, #tpu.memory_space<vmem>>, %arg5: memref<2x32x256xf32, #tpu.memory_space<vmem>>, %arg6: memref<2x32x256xf32, #tpu.memory_space<vmem>>) attributes {dimension_semantics = [#tpu.dimension_semantics<arbitrary>], iteration_bounds = array<i64: 1>, scalar_prefetch = 0 : i64, scratch_operands = 1 : i64, tpu.core_type = #tpu.core_type<tc>, window_params = [{pipeline_mode = #tpu.pipeline_mode<synchronous>, transform_indices = @transform_0, window_bounds = array<i64: 2, 16, 256>}, {pipeline_mode = #tpu.pipeline_mode<synchronous>, transform_indices = @transform_1, window_bounds = array<i64: 32, 16>}, {pipeline_mode = #tpu.pipeline_mode<synchronous>, transform_indices = @transform_2, window_bounds = array<i64: 32, 1>}, {pipeline_mode = #tpu.pipeline_mode<synchronous>, transform_indices = @transform_3, window_bounds = array<i64: 32, 1>}, {pipeline_mode = #tpu.pipeline_mode<synchronous>, transform_indices = @transform_4, window_bounds = array<i64: 2, 32, 256>}]} {
    %c0 = arith.constant 0 : index
    %c0_0 = arith.constant 0 : index
    %0 = vector.load %arg2[%c0, %c0_0] : memref<32x16xf32, #tpu.memory_space<vmem>>, vector<32x16xf32>
    %c0_1 = arith.constant 0 : index
    %c0_2 = arith.constant 0 : index
    %c0_3 = arith.constant 0 : index
    %1 = vector.load %arg1[%c0_1, %c0_2, %c0_3] : memref<2x16x256xf32, #tpu.memory_space<vmem>>, vector<1x16x256xf32>
    %2 = vector.shape_cast %1 : vector<1x16x256xf32> to vector<16x256xf32>
    %cst = arith.constant dense<0.000000e+00> : vector<32x256xf32>
    %3 = tpu.matmul %0, %2, %cst {dimension_numbers = #tpu.dot_dimension_numbers<[1], [0], [0], [1], [0, 0, 1, 1], [], []>} : vector<32x16xf32>, vector<16x256xf32>, vector<32x256xf32> -> vector<32x256xf32>
    %c0_4 = arith.constant 0 : index
    %c0_5 = arith.constant 0 : index
    %c0_6 = arith.constant 0 : index
    %4 = vector.load %arg6[%c0_4, %c0_5, %c0_6] : memref<2x32x256xf32, #tpu.memory_space<vmem>>, vector<1x32x256xf32>
    %5 = vector.shape_cast %4 : vector<1x32x256xf32> to vector<32x256xf32>
    %6 = vector.shape_cast %3 : vector<32x256xf32> to vector<1x32x256xf32>
    tpu.vector_store %arg6[%c0_4, %c0_5, %c0_6], %6 {strides = array<i32>} : memref<2x32x256xf32, #tpu.memory_space<vmem>>, vector<1x32x256xf32>,
    %c1 = arith.constant 1 : index
    %c0_7 = arith.constant 0 : index
    %c0_8 = arith.constant 0 : index
    %7 = vector.load %arg1[%c1, %c0_7, %c0_8] : memref<2x16x256xf32, #tpu.memory_space<vmem>>, vector<1x16x256xf32>
    %8 = vector.shape_cast %7 : vector<1x16x256xf32> to vector<16x256xf32>
    %cst_9 = arith.constant dense<0.000000e+00> : vector<32x256xf32>
    %9 = tpu.matmul %0, %8, %cst_9 {dimension_numbers = #tpu.dot_dimension_numbers<[1], [0], [0], [1], [0, 0, 1, 1], [], []>} : vector<32x16xf32>, vector<16x256xf32>, vector<32x256xf32> -> vector<32x256xf32>
    %c1_10 = arith.constant 1 : index
    %c0_11 = arith.constant 0 : index
    %c0_12 = arith.constant 0 : index
    %10 = vector.load %arg6[%c1_10, %c0_11, %c0_12] : memref<2x32x256xf32, #tpu.memory_space<vmem>>, vector<1x32x256xf32>
    %11 = vector.shape_cast %10 : vector<1x32x256xf32> to vector<32x256xf32>
    %12 = vector.shape_cast %9 : vector<32x256xf32> to vector<1x32x256xf32>
    tpu.vector_store %arg6[%c1_10, %c0_11, %c0_12], %12 {strides = array<i32>} : memref<2x32x256xf32, #tpu.memory_space<vmem>>, vector<1x32x256xf32>,
    %cst_13 = arith.constant 0.000000e+00 : f32
    %13 = vector.broadcast %cst_13 : f32 to vector<32x1xf32>
    %c0_14 = arith.constant 0 : index
    %c0_15 = arith.constant 0 : index
    %c0_16 = arith.constant 0 : index
    %14 = vector.load %arg6[%c0_14, %c0_15, %c0_16] : memref<2x32x256xf32, #tpu.memory_space<vmem>>, vector<1x32x256xf32>
    %15 = vector.shape_cast %14 : vector<1x32x256xf32> to vector<32x256xf32>
    %cst_17 = arith.constant dense<0.000000e+00> : vector<32xf32>
    %16 = vector.multi_reduction <add>, %15, %cst_17 [1] : vector<32x256xf32> to vector<32xf32>
    %17 = vector.shape_cast %16 : vector<32xf32> to vector<32x1xf32>
    %18 = arith.addf %13, %17 : vector<32x1xf32>
    %c1_18 = arith.constant 1 : index
    %c0_19 = arith.constant 0 : index
    %c0_20 = arith.constant 0 : index
    %19 = vector.load %arg6[%c1_18, %c0_19, %c0_20] : memref<2x32x256xf32, #tpu.memory_space<vmem>>, vector<1x32x256xf32>
    %20 = vector.shape_cast %19 : vector<1x32x256xf32> to vector<32x256xf32>
    %cst_21 = arith.constant dense<0.000000e+00> : vector<32xf32>
    %21 = vector.multi_reduction <add>, %20, %cst_21 [1] : vector<32x256xf32> to vector<32xf32>
    %22 = vector.shape_cast %21 : vector<32xf32> to vector<32x1xf32>
    %23 = arith.addf %18, %22 : vector<32x1xf32>
    %cst_22 = arith.constant 2.500000e-03 : f32
    %24 = vector.broadcast %cst_22 : f32 to vector<32x1xf32>
    %25 = arith.mulf %23, %24 : vector<32x1xf32>
    %26 = tpu.iota {dimensions = array<i32: 1>} : vector<32x256xi32>
    %c200_i32 = arith.constant 200 : i32
    %27 = vector.broadcast %c200_i32 : i32 to vector<32x256xi32>
    %28 = arith.cmpi slt, %26, %27 : vector<32x256xi32>
    %cst_23 = arith.constant 0.000000e+00 : f32
    %29 = vector.broadcast %cst_23 : f32 to vector<32x1xf32>
    %c0_24 = arith.constant 0 : index
    %c0_25 = arith.constant 0 : index
    %c0_26 = arith.constant 0 : index
    %30 = vector.load %arg6[%c0_24, %c0_25, %c0_26] : memref<2x32x256xf32, #tpu.memory_space<vmem>>, vector<1x32x256xf32>
    %31 = vector.shape_cast %30 : vector<1x32x256xf32> to vector<32x256xf32>
    %32 = vector.broadcast %25 : vector<32x1xf32> to vector<32x256xf32>
    %33 = arith.subf %31, %32 : vector<32x256xf32>
    %cst_27 = arith.constant 0.000000e+00 : f32
    %34 = vector.broadcast %cst_27 : f32 to vector<32x256xf32>
    %35 = arith.select %28, %33, %34 : vector<32x256xi1>, vector<32x256xf32>
    %36 = arith.mulf %35, %35 : vector<32x256xf32>
    %cst_28 = arith.constant dense<0.000000e+00> : vector<32xf32>
    %37 = vector.multi_reduction <add>, %36, %cst_28 [1] : vector<32x256xf32> to vector<32xf32>
    %38 = vector.shape_cast %37 : vector<32xf32> to vector<32x1xf32>
    %39 = arith.addf %29, %38 : vector<32x1xf32>
    %c1_29 = arith.constant 1 : index
    %c0_30 = arith.constant 0 : index
    %c0_31 = arith.constant 0 : index
    %40 = vector.load %arg6[%c1_29, %c0_30, %c0_31] : memref<2x32x256xf32, #tpu.memory_space<vmem>>, vector<1x32x256xf32>
    %41 = vector.shape_cast %40 : vector<1x32x256xf32> to vector<32x256xf32>
    %42 = vector.broadcast %25 : vector<32x1xf32> to vector<32x256xf32>
    %43 = arith.subf %41, %42 : vector<32x256xf32>
    %cst_32 = arith.constant 0.000000e+00 : f32
    %44 = vector.broadcast %cst_32 : f32 to vector<32x256xf32>
    %45 = arith.select %28, %43, %44 : vector<32x256xi1>, vector<32x256xf32>
    %46 = arith.mulf %45, %45 : vector<32x256xf32>
    %cst_33 = arith.constant dense<0.000000e+00> : vector<32xf32>
    %47 = vector.multi_reduction <add>, %46, %cst_33 [1] : vector<32x256xf32> to vector<32xf32>
    %48 = vector.shape_cast %47 : vector<32xf32> to vector<32x1xf32>
    %49 = arith.addf %39, %48 : vector<32x1xf32>
    %cst_34 = arith.constant 2.500000e-03 : f32
    %50 = vector.broadcast %cst_34 : f32 to vector<32x1xf32>
    %51 = arith.mulf %49, %50 : vector<32x1xf32>
    %c0_35 = arith.constant 0 : index
    %c0_36 = arith.constant 0 : index
    %52 = vector.load %arg3[%c0_35, %c0_36] : memref<32x1xf32, #tpu.memory_space<vmem>>, vector<32x1xf32>
    %cst_37 = arith.constant 9.99999974E-6 : f32
    %53 = vector.broadcast %cst_37 : f32 to vector<32x1xf32>
    %54 = arith.addf %51, %53 : vector<32x1xf32>
    %55 = math.rsqrt %54 : vector<32x1xf32>
    %56 = arith.mulf %52, %55 : vector<32x1xf32>
    %c0_38 = arith.constant 0 : index
    %c0_39 = arith.constant 0 : index
    %57 = vector.load %arg4[%c0_38, %c0_39] : memref<32x1xf32, #tpu.memory_space<vmem>>, vector<32x1xf32>
    %58 = arith.mulf %25, %56 : vector<32x1xf32>
    %59 = arith.subf %57, %58 : vector<32x1xf32>
    %c0_40 = arith.constant 0 : index
    %c0_41 = arith.constant 0 : index
    %c0_42 = arith.constant 0 : index
    %60 = vector.load %arg6[%c0_40, %c0_41, %c0_42] : memref<2x32x256xf32, #tpu.memory_space<vmem>>, vector<1x32x256xf32>
    %61 = vector.shape_cast %60 : vector<1x32x256xf32> to vector<32x256xf32>
    %62 = vector.broadcast %56 : vector<32x1xf32> to vector<32x256xf32>
    %63 = arith.mulf %61, %62 : vector<32x256xf32>
    %64 = vector.broadcast %59 : vector<32x1xf32> to vector<32x256xf32>
    %65 = arith.addf %63, %64 : vector<32x256xf32>
    %cst_43 = arith.constant 0.000000e+00 : f32
    %66 = vector.broadcast %cst_43 : f32 to vector<32x256xf32>
    %67 = arith.maximumf %65, %66 : vector<32x256xf32>
    %c0_44 = arith.constant 0 : index
    %c0_45 = arith.constant 0 : index
    %c0_46 = arith.constant 0 : index
    %68 = vector.load %arg5[%c0_44, %c0_45, %c0_46] : memref<2x32x256xf32, #tpu.memory_space<vmem>>, vector<1x32x256xf32>
    %69 = vector.shape_cast %68 : vector<1x32x256xf32> to vector<32x256xf32>
    %70 = vector.shape_cast %67 : vector<32x256xf32> to vector<1x32x256xf32>
    tpu.vector_store %arg5[%c0_44, %c0_45, %c0_46], %70 {strides = array<i32>} : memref<2x32x256xf32, #tpu.memory_space<vmem>>, vector<1x32x256xf32>,
    %c1_47 = arith.constant 1 : index
    %c0_48 = arith.constant 0 : index
    %c0_49 = arith.constant 0 : index
    %71 = vector.load %arg6[%c1_47, %c0_48, %c0_49] : memref<2x32x256xf32, #tpu.memory_space<vmem>>, vector<1x32x256xf32>
    %72 = vector.shape_cast %71 : vector<1x32x256xf32> to vector<32x256xf32>
    %73 = vector.broadcast %56 : vector<32x1xf32> to vector<32x256xf32>
    %74 = arith.mulf %72, %73 : vector<32x256xf32>
    %75 = vector.broadcast %59 : vector<32x1xf32> to vector<32x256xf32>
    %76 = arith.addf %74, %75 : vector<32x256xf32>
    %cst_50 = arith.constant 0.000000e+00 : f32
    %77 = vector.broadcast %cst_50 : f32 to vector<32x256xf32>
    %78 = arith.maximumf %76, %77 : vector<32x256xf32>
    %c1_51 = arith.constant 1 : index
    %c0_52 = arith.constant 0 : index
    %c0_53 = arith.constant 0 : index
    %79 = vector.load %arg5[%c1_51, %c0_52, %c0_53] : memref<2x32x256xf32, #tpu.memory_space<vmem>>, vector<1x32x256xf32>
    %80 = vector.shape_cast %79 : vector<1x32x256xf32> to vector<32x256xf32>
    %81 = vector.shape_cast %78 : vector<32x256xf32> to vector<1x32x256xf32>
    tpu.vector_store %arg5[%c1_51, %c0_52, %c0_53], %81 {strides = array<i32>} : memref<2x32x256xf32, #tpu.memory_space<vmem>>, vector<1x32x256xf32>,
    return
  }
  func.func @transform_0(%arg0: i32) -> (i32, i32, i32) {
    %c0_i32 = arith.constant 0 : i32
    %c0_i32_0 = arith.constant 0 : i32
    %c0_i32_1 = arith.constant 0 : i32
    %c0_i32_2 = arith.constant 0 : i32
    return %c0_i32, %c0_i32_0, %c0_i32_1 : i32, i32, i32
  }
  func.func @transform_1(%arg0: i32) -> (i32, i32) {
    %c0_i32 = arith.constant 0 : i32
    %c0_i32_0 = arith.constant 0 : i32
    %c0_i32_1 = arith.constant 0 : i32
    return %c0_i32, %c0_i32_0 : i32, i32
  }
  func.func @transform_2(%arg0: i32) -> (i32, i32) {
    %c0_i32 = arith.constant 0 : i32
    %c0_i32_0 = arith.constant 0 : i32
    %c0_i32_1 = arith.constant 0 : i32
    return %c0_i32, %c0_i32_0 : i32, i32
  }
  func.func @transform_3(%arg0: i32) -> (i32, i32) {
    %c0_i32 = arith.constant 0 : i32
    %c0_i32_0 = arith.constant 0 : i32
    %c0_i32_1 = arith.constant 0 : i32
    return %c0_i32, %c0_i32_0 : i32, i32
  }
  func.func @transform_4(%arg0: i32) -> (i32, i32, i32) {
    %c0_i32 = arith.constant 0 : i32
    %c0_i32_0 = arith.constant 0 : i32
    %c0_i32_1 = arith.constant 0 : i32
    %c0_i32_2 = arith.constant 0 : i32
    return %c0_i32, %c0_i32_0, %c0_i32_1 : i32, i32, i32
  }
}

</mosaic_0001>

<llo_original>
// kernel: tpu_custom_call.1
$region0: #{tpu_custom_call.1}
  #allocation0 [shape = 'u32[]', space=smem, size = 0x4, offset = 0x4, fixed_abs, tag = 'smem constant byte address 0x4 - core index']
  #allocation1 [shape = 'u32[144,128]{1,0:T(1,128)}', space=vmem, size = 0x12000, scoped, tag = 'internal scratch']
  #allocation2 [shape = 'f32[2,32,256]{2,1,0:T(8,128)}', space=vmem, size = 0x10000, scoped, tag = 'scratch operand']
  %s0 = inlined_call_operand.vmem [shape: f32[2,16,256], index: 0, kind: input, shape index: {}]
  %s1 = inlined_call_operand.vmem [shape: f32[32,16], index: 1, kind: input, shape index: {}]
  %s2 = inlined_call_operand.vmem [shape: f32[32,1], index: 2, kind: input, shape index: {}]
  %s3 = inlined_call_operand.vmem [shape: f32[32,1], index: 3, kind: input, shape index: {}]
  %s4 = inlined_call_operand.hbm [shape: f32[2,32,256], index: 4, kind: output, shape index: {}]
  %s5 = sld [smem:[#allocation0]]
  $region26: #{tpu_custom_call.1} parent=0
    _
  %s7 = ssub.s32 1, %s5
  %s8 = scalar_select 0, %s7, %s5
  $region1: #{tpu_custom_call.1} parent=0
    #allocation3 [shape = 'u8[65536]{0}', space=vmem, size = 0x10000, scoped, tag = 'output window, operand 0, single buffered']
    #allocation4 [shape = 's32[1]{0}', space=sflag, size = 0x4, scoped, tag = 'scoped memory for tpu_custom_call.1']
    %9 = vsyncpa [#allocation4], 0
    // Predicated region
    $region2: #{tpu_custom_call.1} parent=1 // pred_check
      _
    $region3: #{tpu_custom_call.1} parent=1 // pred_check_branch
      %11 = sbr.rel (0) target = $region5
    $region4: #{tpu_custom_call.1} parent=1 // pred_region
      _
    $region5: #{tpu_custom_call.1} parent=1 // pred_fallthru
      _
    // Predicated region
    $region6: #{tpu_custom_call.1} parent=1 // pred_check
      _
    $region7: #{tpu_custom_call.1} parent=1 // pred_check_branch
      %13 = sbr.rel (0) target = $region9
    $region8: #{tpu_custom_call.1} parent=1 // pred_region
      _
    $region9: #{tpu_custom_call.1} parent=1 // pred_fallthru
      _
    // Predicated region
    $region10: #{tpu_custom_call.1} parent=1 // pred_check
      _
    $region11: #{tpu_custom_call.1} parent=1 // pred_check_branch
      %15 = sbr.rel (0) target = $region13
    $region12: #{tpu_custom_call.1} parent=1 // pred_region
      _
    $region13: #{tpu_custom_call.1} parent=1 // pred_fallthru
      _
    // Predicated region
    $region14: #{tpu_custom_call.1} parent=1 // pred_check
      _
    $region15: #{tpu_custom_call.1} parent=1 // pred_check_branch
      %17 = sbr.rel (0) target = $region17
    $region16: #{tpu_custom_call.1} parent=1 // pred_region
      _
    $region17: #{tpu_custom_call.1} parent=1 // pred_fallthru
      _
    %v18 = vld [vmem:[%s1] sm:$0xff]
    %v19 = vld [vmem:[%s1 + $0x8] sm:$0xff]
    %v20 = vld [vmem:[%s1 + $0x10] sm:$0xff]
    %v21 = vld [vmem:[%s1 + $0x18] sm:$0xff]
    %v22 = vld [vmem:[%s0] sm:$0xff]
    %v23 = vld [vmem:[%s0 + $0x8] sm:$0xff]
    %v24 = vld [vmem:[%s0 + $0x10] sm:$0xff]
    %v25 = vld [vmem:[%s0 + $0x18] sm:$0xff]
    %vm26 = vcmask 130048
    %v28 = vsel %vm26, %v18, 0
    %v31 = vsel %vm26, %v19, 0
    %v34 = vsel %vm26, %v20, 0
    %v37 = vsel %vm26, %v21, 0
    %39 = vmatprep.subr.mxu0 %v23
    %40 = vmatpush1.msra.mxu0 %v22
    %41 = vmatprep.subr.mxu0 %v25
    %42 = vmatpush1.msra.mxu0 %v24
    %43 = vmatprep.subr.mxu0 0.0
    %44 = vmatpush1.msra.mxu0 0.0
    %45 = vmatprep.subr.mxu0 0.0
    %46 = vmatpush1.msra.mxu0 0.0
    %47 = vmatprep.subr.mxu0 0.0
    %48 = vmatpush1.msra.mxu0 0.0
    %49 = vmatprep.subr.mxu0 0.0
    %50 = vmatpush1.msra.mxu0 0.0
    %51 = vmatprep.subr.mxu0 0.0
    %52 = vmatpush1.msra.mxu0 0.0
    %53 = vmatprep.subr.mxu0 0.0
    %54 = vmatpush1.msra.mxu0 0.0
    %55 = vmatprep.subr.mxu0 0.0
    %56 = vmatpush1.msra.mxu0 0.0
    %57 = vmatprep.subr.mxu0 0.0
    %58 = vmatpush1.msra.mxu0 0.0
    %59 = vmatprep.subr.mxu0 0.0
    %60 = vmatpush1.msra.mxu0 0.0
    %61 = vmatprep.subr.mxu0 0.0
    %62 = vmatpush1.msra.mxu0 0.0
    %63 = vmatprep.subr.mxu0 0.0
    %64 = vmatpush1.msra.mxu0 0.0
    %65 = vmatprep.subr.mxu0 0.0
    %66 = vmatpush1.msra.mxu0 0.0
    %67 = vmatprep.subr.mxu0 0.0
    %68 = vmatpush1.msra.mxu0 0.0
    %69 = vmatprep.subr.mxu0 0.0
    %70 = vmatpush1.msra.mxu0 0.0
    %71 = vmatprep.subr.mxu0 0.0
    %72 = vmatpush1.msra.mxu0 0.0
    %73 = vmatprep.subr.mxu0 0.0
    %74 = vmatpush1.msra.mxu0 0.0
    %75 = vmatprep.subr.mxu0 0.0
    %76 = vmatpush1.msra.mxu0 0.0
    %77 = vmatprep.subr.mxu0 0.0
    %78 = vmatpush1.msra.mxu0 0.0
    %79 = vmatprep.subr.mxu0 0.0
    %80 = vmatpush1.msra.mxu0 0.0
    %81 = vmatprep.subr.mxu0 0.0
    %82 = vmatpush1.msra.mxu0 0.0
    %83 = vmatprep.subr.mxu0 0.0
    %84 = vmatpush1.msra.mxu0 0.0
    %85 = vmatprep.subr.mxu0 0.0
    %86 = vmatpush1.msra.mxu0 0.0
    %87 = vmatprep.subr.mxu0 0.0
    %88 = vmatpush1.msra.mxu0 0.0
    %89 = vmatprep.subr.mxu0 0.0
    %90 = vmatpush1.msra.mxu0 0.0
    %91 = vmatprep.subr.mxu0 0.0
    %92 = vmatpush1.msra.mxu0 0.0
    %93 = vmatprep.subr.mxu0 0.0
    %94 = vmatpush1.msra.mxu0 0.0
    %95 = vmatprep.subr.mxu0 0.0
    %96 = vmatpush1.msra.mxu0 0.0
    %97 = vmatprep.subr.mxu0 0.0
    %98 = vmatpush1.msra.mxu0 0.0
    %99 = vmatprep.subr.mxu0 0.0
    %100 = vmatpush1.msra.mxu0 0.0
    %101 = vmatprep.subr.mxu0 0.0
    %102 = vmatpush1.msra.mxu0 0.0
    %103 = vmatprep.mubr.f32.mxu0 0.0
    %104 = vmatmul.mubr.f32.gmra.mrb[0].mxu0 %v28
    %v105 = vpop.f32.mrb[0].mxu0
    %v106 = vadd.f32 0.0, %v105
    %v107 = vpop.f32.mrb[0].mxu0
    %v108 = vadd.f32 0.0, %v107
    %109 = vmatprep.mubr.f32.mxu0 0.0
    %110 = vmatmul.mubr.f32.gmra.mrb[0].mxu0 %v31
    %v111 = vpop.f32.mrb[0].mxu0
    %v112 = vadd.f32 0.0, %v111
    %v113 = vpop.f32.mrb[0].mxu0
    %v114 = vadd.f32 0.0, %v113
    %115 = vmatprep.mubr.f32.mxu0 0.0
    %116 = vmatmul.mubr.f32.gmra.mrb[0].mxu0 %v34
    %v117 = vpop.f32.mrb[0].mxu0
    %v118 = vadd.f32 0.0, %v117
    %v119 = vpop.f32.mrb[0].mxu0
    %v120 = vadd.f32 0.0, %v119
    %121 = vmatprep.mubr.f32.mxu0 0.0
    %122 = vmatmul.mubr.f32.gmra.mrb[0].mxu0 %v37
    %v123 = vpop.f32.mrb[0].mxu0
    %v124 = vadd.f32 0.0, %v123
    %v125 = vpop.f32.mrb[0].mxu0
    %v126 = vadd.f32 0.0, %v125
    %127 = vdwg.mxu0
    %128 = vst [vmem:[#allocation2] sm:$0xff] %v106
    %129 = vst [vmem:[#allocation2 + $0x8] sm:$0xff] %v108
    %130 = vst [vmem:[#allocation2 + $0x10] sm:$0xff] %v112
    %131 = vst [vmem:[#allocation2 + $0x18] sm:$0xff] %v114
    %132 = vst [vmem:[#allocation2 + $0x20] sm:$0xff] %v118
    %133 = vst [vmem:[#allocation2 + $0x28] sm:$0xff] %v120
    %134 = vst [vmem:[#allocation2 + $0x30] sm:$0xff] %v124
    %135 = vst [vmem:[#allocation2 + $0x38] sm:$0xff] %v126
    %s136 = scalar_lea.vmem %s0, 32
    %v137 = vld [vmem:[%s136] sm:$0xff]
    %v138 = vld [vmem:[%s136 + $0x8] sm:$0xff]
    %v139 = vld [vmem:[%s136 + $0x10] sm:$0xff]
    %v140 = vld [vmem:[%s136 + $0x18] sm:$0xff]
    %141 = vmatprep.subr.mxu0 %v138
    %142 = vmatpush1.msra.mxu0 %v137
    %143 = vmatprep.subr.mxu0 %v140
    %144 = vmatpush1.msra.mxu0 %v139
    %145 = vmatprep.subr.mxu0 0.0
    %146 = vmatpush1.msra.mxu0 0.0
    %147 = vmatprep.subr.mxu0 0.0
    %148 = vmatpush1.msra.mxu0 0.0
    %149 = vmatprep.subr.mxu0 0.0
    %150 = vmatpush1.msra.mxu0 0.0
    %151 = vmatprep.subr.mxu0 0.0
    %152 = vmatpush1.msra.mxu0 0.0
    %153 = vmatprep.subr.mxu0 0.0
    %154 = vmatpush1.msra.mxu0 0.0
    %155 = vmatprep.subr.mxu0 0.0
    %156 = vmatpush1.msra.mxu0 0.0
    %157 = vmatprep.subr.mxu0 0.0
    %158 = vmatpush1.msra.mxu0 0.0
    %159 = vmatprep.subr.mxu0 0.0
    %160 = vmatpush1.msra.mxu0 0.0
    %161 = vmatprep.subr.mxu0 0.0
    %162 = vmatpush1.msra.mxu0 0.0
    %163 = vmatprep.subr.mxu0 0.0
    %164 = vmatpush1.msra.mxu0 0.0
    %165 = vmatprep.subr.mxu0 0.0
    %166 = vmatpush1.msra.mxu0 0.0
    %167 = vmatprep.subr.mxu0 0.0
    %168 = vmatpush1.msra.mxu0 0.0
    %169 = vmatprep.subr.mxu0 0.0
    %170 = vmatpush1.msra.mxu0 0.0
    %171 = vmatprep.subr.mxu0 0.0
    %172 = vmatpush1.msra.mxu0 0.0
    %173 = vmatprep.subr.mxu0 0.0
    %174 = vmatpush1.msra.mxu0 0.0
    %175 = vmatprep.subr.mxu0 0.0
    %176 = vmatpush1.msra.mxu0 0.0
    %177 = vmatprep.subr.mxu0 0.0
    %178 = vmatpush1.msra.mxu0 0.0
    %179 = vmatprep.subr.mxu0 0.0
    %180 = vmatpush1.msra.mxu0 0.0
    %181 = vmatprep.subr.mxu0 0.0
    %182 = vmatpush1.msra.mxu0 0.0
    %183 = vmatprep.subr.mxu0 0.0
    %184 = vmatpush1.msra.mxu0 0.0
    %185 = vmatprep.subr.mxu0 0.0
    %186 = vmatpush1.msra.mxu0 0.0
    %187 = vmatprep.subr.mxu0 0.0
    %188 = vmatpush1.msra.mxu0 0.0
    %189 = vmatprep.subr.mxu0 0.0
    %190 = vmatpush1.msra.mxu0 0.0
    %191 = vmatprep.subr.mxu0 0.0
    %192 = vmatpush1.msra.mxu0 0.0
    %193 = vmatprep.subr.mxu0 0.0
    %194 = vmatpush1.msra.mxu0 0.0
    %195 = vmatprep.subr.mxu0 0.0
    %196 = vmatpush1.msra.mxu0 0.0
    %197 = vmatprep.subr.mxu0 0.0
    %198 = vmatpush1.msra.mxu0 0.0
    %199 = vmatprep.subr.mxu0 0.0
    %200 = vmatpush1.msra.mxu0 0.0
    %201 = vmatprep.subr.mxu0 0.0
    %202 = vmatpush1.msra.mxu0 0.0
    %203 = vmatprep.subr.mxu0 0.0
    %204 = vmatpush1.msra.mxu0 0.0
    %205 = vmatprep.mubr.f32.mxu0 0.0
    %206 = vmatmul.mubr.f32.gmra.mrb[0].mxu0 %v28
    %v207 = vpop.f32.mrb[0].mxu0
    %v208 = vadd.f32 0.0, %v207
    %v209 = vpop.f32.mrb[0].mxu0
    %v210 = vadd.f32 0.0, %v209
    %211 = vmatprep.mubr.f32.mxu0 0.0
    %212 = vmatmul.mubr.f32.gmra.mrb[0].mxu0 %v31
    %v213 = vpop.f32.mrb[0].mxu0
    %v214 = vadd.f32 0.0, %v213
    %v215 = vpop.f32.mrb[0].mxu0
    %v216 = vadd.f32 0.0, %v215
    %217 = vmatprep.mubr.f32.mxu0 0.0
    %218 = vmatmul.mubr.f32.gmra.mrb[0].mxu0 %v34
    %v219 = vpop.f32.mrb[0].mxu0
    %v220 = vadd.f32 0.0, %v219
    %v221 = vpop.f32.mrb[0].mxu0
    %v222 = vadd.f32 0.0, %v221
    %223 = vmatprep.mubr.f32.mxu0 0.0
    %224 = vmatmul.mubr.f32.gmra.mrb[0].mxu0 %v37
    %v225 = vpop.f32.mrb[0].mxu0
    %v226 = vadd.f32 0.0, %v225
    %v227 = vpop.f32.mrb[0].mxu0
    %v228 = vadd.f32 0.0, %v227
    %229 = vdwg.mxu0
    %s230 = scalar_lea.vmem [#allocation2], 64
    %231 = vst [vmem:[%s230] sm:$0xff] %v208
    %232 = vst [vmem:[%s230 + $0x8] sm:$0xff] %v210
    %233 = vst [vmem:[%s230 + $0x10] sm:$0xff] %v214
    %234 = vst [vmem:[%s230 + $0x18] sm:$0xff] %v216
    %235 = vst [vmem:[%s230 + $0x20] sm:$0xff] %v220
    %236 = vst [vmem:[%s230 + $0x28] sm:$0xff] %v222
    %237 = vst [vmem:[%s230 + $0x30] sm:$0xff] %v226
    %238 = vst [vmem:[%s230 + $0x38] sm:$0xff] %v228
    %v239 = vld [vmem:[#allocation2] sm:$0xff]
    %v240 = vld [vmem:[#allocation2 + $0x8] sm:$0xff]
    %v241 = vld [vmem:[#allocation2 + $0x10] sm:$0xff]
    %v242 = vld [vmem:[#allocation2 + $0x18] sm:$0xff]
    %v243 = vld [vmem:[#allocation2 + $0x20] sm:$0xff]
    %v244 = vld [vmem:[#allocation2 + $0x28] sm:$0xff]
    %v245 = vld [vmem:[#allocation2 + $0x30] sm:$0xff]
    %v246 = vld [vmem:[#allocation2 + $0x38] sm:$0xff]
    %v247 = vadd.f32 %v239, %v240
    %248 = vadd.xlane.f32.xlu0 %v247
    %v249 = vpop.xlane.xlu0 %248
    %v250 = vadd.f32 %v241, %v242
    %251 = vadd.xlane.f32.xlu0 %v250
    %v252 = vpop.xlane.xlu0 %251
    %v253 = vadd.f32 %v243, %v244
    %254 = vadd.xlane.f32.xlu0 %v253
    %v255 = vpop.xlane.xlu0 %254
    %v256 = vadd.f32 %v245, %v246
    %257 = vadd.xlane.f32.xlu0 %v256
    %v258 = vpop.xlane.xlu0 %257
    %v259 = vadd.f32 %v249, 0.0
    %v260 = vadd.f32 %v252, 0.0
    %v261 = vadd.f32 %v255, 0.0
    %v262 = vadd.f32 %v258, 0.0
    %v263 = vld [vmem:[%s230] sm:$0xff]
    %v264 = vld [vmem:[%s230 + $0x8] sm:$0xff]
    %v265 = vld [vmem:[%s230 + $0x10] sm:$0xff]
    %v266 = vld [vmem:[%s230 + $0x18] sm:$0xff]
    %v267 = vld [vmem:[%s230 + $0x20] sm:$0xff]
    %v268 = vld [vmem:[%s230 + $0x28] sm:$0xff]
    %v269 = vld [vmem:[%s230 + $0x30] sm:$0xff]
    %v270 = vld [vmem:[%s230 + $0x38] sm:$0xff]
    %v271 = vadd.f32 %v263, %v264
    %272 = vadd.xlane.f32.xlu0 %v271
    %v273 = vpop.xlane.xlu0 %272
    %v274 = vadd.f32 %v265, %v266
    %275 = vadd.xlane.f32.xlu0 %v274
    %v276 = vpop.xlane.xlu0 %275
    %v277 = vadd.f32 %v267, %v268
    %278 = vadd.xlane.f32.xlu0 %v277
    %v279 = vpop.xlane.xlu0 %278
    %v280 = vadd.f32 %v269, %v270
    %281 = vadd.xlane.f32.xlu0 %v280
    %v282 = vpop.xlane.xlu0 %281
    %v283 = vadd.f32 %v259, %v273
    %v284 = vadd.f32 %v260, %v276
    %v285 = vadd.f32 %v261, %v279
    %v286 = vadd.f32 %v262, %v282
    %v287 = vmul.f32 %v283, 0.0025
    %v288 = vmul.f32 %v284, 0.0025
    %v289 = vmul.f32 %v285, 0.0025
    %v290 = vmul.f32 %v286, 0.0025
    %v291 = vlaneseq
    %v292 = vand.u32 %v291, 127
    %v293 = vadd.s32 %v292, 128
    %vm294 = vcmp.lt.s32.totalorder %v292, 200
    %vm295 = vcmp.lt.s32.totalorder %v293, 200
    %v296 = vsub.f32 %v239, %v287
    %v297 = vsub.f32 %v240, %v287
    %v298 = vsub.f32 %v241, %v288
    %v299 = vsub.f32 %v242, %v288
    %v300 = vsub.f32 %v243, %v289
    %v301 = vsub.f32 %v244, %v289
    %v302 = vsub.f32 %v245, %v290
    %v303 = vsub.f32 %v246, %v290
    %v304 = vsel %vm294, %v296, 0.0
    %v305 = vsel %vm295, %v297, 0.0
    %v306 = vsel %vm294, %v298, 0.0
    %v307 = vsel %vm295, %v299, 0.0
    %v308 = vsel %vm294, %v300, 0.0
    %v309 = vsel %vm295, %v301, 0.0
    %v310 = vsel %vm294, %v302, 0.0
    %v311 = vsel %vm295, %v303, 0.0
    %v312 = vmul.f32 %v304, %v304
    %v313 = vmul.f32 %v305, %v305
    %v314 = vmul.f32 %v306, %v306
    %v315 = vmul.f32 %v307, %v307
    %v316 = vmul.f32 %v308, %v308
    %v317 = vmul.f32 %v309, %v309
    %v318 = vmul.f32 %v310, %v310
    %v319 = vmul.f32 %v311, %v311
    %v320 = vadd.f32 %v312, %v313
    %321 = vadd.xlane.f32.xlu0 %v320
    %v322 = vpop.xlane.xlu0 %321
    %v323 = vadd.f32 %v314, %v315
    %324 = vadd.xlane.f32.xlu0 %v323
    %v325 = vpop.xlane.xlu0 %324
    %v326 = vadd.f32 %v316, %v317
    %327 = vadd.xlane.f32.xlu0 %v326
    %v328 = vpop.xlane.xlu0 %327
    %v329 = vadd.f32 %v318, %v319
    %330 = vadd.xlane.f32.xlu0 %v329
    %v331 = vpop.xlane.xlu0 %330
    %v332 = vadd.f32 %v322, 0.0
    %v333 = vadd.f32 %v325, 0.0
    %v334 = vadd.f32 %v328, 0.0
    %v335 = vadd.f32 %v331, 0.0
    %v336 = vsub.f32 %v263, %v287
    %v337 = vsub.f32 %v264, %v287
    %v338 = vsub.f32 %v265, %v288
    %v339 = vsub.f32 %v266, %v288
    %v340 = vsub.f32 %v267, %v289
    %v341 = vsub.f32 %v268, %v289
    %v342 = vsub.f32 %v269, %v290
    %v343 = vsub.f32 %v270, %v290
    %v344 = vsel %vm294, %v336, 0.0
    %v345 = vsel %vm295, %v337, 0.0
    %v346 = vsel %vm294, %v338, 0.0
    %v347 = vsel %vm295, %v339, 0.0
    %v348 = vsel %vm294, %v340, 0.0
    %v349 = vsel %vm295, %v341, 0.0
    %v350 = vsel %vm294, %v342, 0.0
    %v351 = vsel %vm295, %v343, 0.0
    %v352 = vmul.f32 %v344, %v344
    %v353 = vmul.f32 %v345, %v345
    %v354 = vmul.f32 %v346, %v346
    %v355 = vmul.f32 %v347, %v347
    %v356 = vmul.f32 %v348, %v348
    %v357 = vmul.f32 %v349, %v349
    %v358 = vmul.f32 %v350, %v350
    %v359 = vmul.f32 %v351, %v351
    %v360 = vadd.f32 %v352, %v353
    %361 = vadd.xlane.f32.xlu0 %v360
    %v362 = vpop.xlane.xlu0 %361
    %v363 = vadd.f32 %v354, %v355
    %364 = vadd.xlane.f32.xlu0 %v363
    %v365 = vpop.xlane.xlu0 %364
    %v366 = vadd.f32 %v356, %v357
    %367 = vadd.xlane.f32.xlu0 %v366
    %v368 = vpop.xlane.xlu0 %367
    %v369 = vadd.f32 %v358, %v359
    %370 = vadd.xlane.f32.xlu0 %v369
    %v371 = vpop.xlane.xlu0 %370
    %v372 = vadd.f32 %v332, %v362
    %v373 = vadd.f32 %v333, %v365
    %v374 = vadd.f32 %v334, %v368
    %v375 = vadd.f32 %v335, %v371
    %v376 = vmul.f32 %v372, 0.0025
    %v377 = vmul.f32 %v373, 0.0025
    %v378 = vmul.f32 %v374, 0.0025
    %v379 = vmul.f32 %v375, 0.0025
    %v380 = vld [vmem:[%s2] sm:$0xff]
    %v381 = vld [vmem:[%s2 + $0x8] sm:$0xff]
    %v382 = vld [vmem:[%s2 + $0x10] sm:$0xff]
    %v383 = vld [vmem:[%s2 + $0x18] sm:$0xff]
    %v384 = vadd.f32 %v376, 1e-05
    %v385 = vadd.f32 %v377, 1e-05
    %v386 = vadd.f32 %v378, 1e-05
    %v387 = vadd.f32 %v379, 1e-05
    %v388 = vrsqrt.pop %v384
    %v389 = vrsqrt.pop %v385
    %v390 = vrsqrt.pop %v386
    %v391 = vrsqrt.pop %v387
    %v392 = vmul.f32 %v380, %v388
    %v393 = vmul.f32 %v381, %v389
    %v394 = vmul.f32 %v382, %v390
    %v395 = vmul.f32 %v383, %v391
    %v396 = vld [vmem:[%s3] sm:$0xff]
    %v397 = vld [vmem:[%s3 + $0x8] sm:$0xff]
    %v398 = vld [vmem:[%s3 + $0x10] sm:$0xff]
    %v399 = vld [vmem:[%s3 + $0x18] sm:$0xff]
    %v400 = vmul.f32 %v287, %v392
    %v401 = vmul.f32 %v288, %v393
    %v402 = vmul.f32 %v289, %v394
    %v403 = vmul.f32 %v290, %v395
    %v404 = vsub.f32 %v396, %v400
    %v405 = vsub.f32 %v397, %v401
    %v406 = vsub.f32 %v398, %v402
    %v407 = vsub.f32 %v399, %v403
    %409 = vset.pattern.permute.xlu0 0
    %410 = vperm.xlu0 %409, %v392
    %v411 = vpop.permute.xlu0 %410
    %414 = vset.pattern.permute.xlu0 0
    %415 = vperm.xlu0 %414, %v393
    %v416 = vpop.permute.xlu0 %415
    %419 = vset.pattern.permute.xlu0 0
    %420 = vperm.xlu0 %419, %v394
    %v421 = vpop.permute.xlu0 %420
    %424 = vset.pattern.permute.xlu0 0
    %425 = vperm.xlu0 %424, %v395
    %v426 = vpop.permute.xlu0 %425
    %v428 = vmul.f32 %v239, %v411
    %v429 = vmul.f32 %v240, %v411
    %v430 = vmul.f32 %v241, %v416
    %v431 = vmul.f32 %v242, %v416
    %v432 = vmul.f32 %v243, %v421
    %v433 = vmul.f32 %v244, %v421
    %v434 = vmul.f32 %v245, %v426
    %v435 = vmul.f32 %v246, %v426
    %437 = vset.pattern.permute.xlu0 0
    %438 = vperm.xlu0 %437, %v404
    %v439 = vpop.permute.xlu0 %438
    %442 = vset.pattern.permute.xlu0 0
    %443 = vperm.xlu0 %442, %v405
    %v444 = vpop.permute.xlu0 %443
    %447 = vset.pattern.permute.xlu0 0
    %448 = vperm.xlu0 %447, %v406
    %v449 = vpop.permute.xlu0 %448
    %452 = vset.pattern.permute.xlu0 0
    %453 = vperm.xlu0 %452, %v407
    %v454 = vpop.permute.xlu0 %453
    %v456 = vadd.f32 %v428, %v439
    %v457 = vadd.f32 %v429, %v439
    %v458 = vadd.f32 %v430, %v444
    %v459 = vadd.f32 %v431, %v444
    %v460 = vadd.f32 %v432, %v449
    %v461 = vadd.f32 %v433, %v449
    %v462 = vadd.f32 %v434, %v454
    %v463 = vadd.f32 %v435, %v454
    %v464 = vmax.f32 %v456, 0.0
    %v465 = vmax.f32 %v457, 0.0
    %v466 = vmax.f32 %v458, 0.0
    %v467 = vmax.f32 %v459, 0.0
    %v468 = vmax.f32 %v460, 0.0
    %v469 = vmax.f32 %v461, 0.0
    %v470 = vmax.f32 %v462, 0.0
    %v471 = vmax.f32 %v463, 0.0
    %472 = vst [vmem:[#allocation3] sm:$0xff] %v464
    %473 = vst [vmem:[#allocation3 + $0x8] sm:$0xff] %v465
    %474 = vst [vmem:[#allocation3 + $0x10] sm:$0xff] %v466
    %475 = vst [vmem:[#allocation3 + $0x18] sm:$0xff] %v467
    %476 = vst [vmem:[#allocation3 + $0x20] sm:$0xff] %v468
    %477 = vst [vmem:[#allocation3 + $0x28] sm:$0xff] %v469
    %478 = vst [vmem:[#allocation3 + $0x30] sm:$0xff] %v470
    %479 = vst [vmem:[#allocation3 + $0x38] sm:$0xff] %v471
    %v480 = vld [vmem:[%s230] sm:$0xff]
    %v481 = vld [vmem:[%s230 + $0x8] sm:$0xff]
    %v482 = vld [vmem:[%s230 + $0x10] sm:$0xff]
    %v483 = vld [vmem:[%s230 + $0x18] sm:$0xff]
    %v484 = vld [vmem:[%s230 + $0x20] sm:$0xff]
    %v485 = vld [vmem:[%s230 + $0x28] sm:$0xff]
    %v486 = vld [vmem:[%s230 + $0x30] sm:$0xff]
    %v487 = vld [vmem:[%s230 + $0x38] sm:$0xff]
    %v488 = vmul.f32 %v480, %v411
    %v489 = vmul.f32 %v481, %v411
    %v490 = vmul.f32 %v482, %v416
    %v491 = vmul.f32 %v483, %v416
    %v492 = vmul.f32 %v484, %v421
    %v493 = vmul.f32 %v485, %v421
    %v494 = vmul.f32 %v486, %v426
    %v495 = vmul.f32 %v487, %v426
    %v496 = vadd.f32 %v488, %v439
    %v497 = vadd.f32 %v489, %v439
    %v498 = vadd.f32 %v490, %v444
    %v499 = vadd.f32 %v491, %v444
    %v500 = vadd.f32 %v492, %v449
    %v501 = vadd.f32 %v493, %v449
    %v502 = vadd.f32 %v494, %v454
    %v503 = vadd.f32 %v495, %v454
    %v504 = vmax.f32 %v496, 0.0
    %v505 = vmax.f32 %v497, 0.0
    %v506 = vmax.f32 %v498, 0.0
    %v507 = vmax.f32 %v499, 0.0
    %v508 = vmax.f32 %v500, 0.0
    %v509 = vmax.f32 %v501, 0.0
    %v510 = vmax.f32 %v502, 0.0
    %v511 = vmax.f32 %v503, 0.0
    %s512 = scalar_lea.vmem [#allocation3], 64
    %513 = vst [vmem:[%s512] sm:$0xff] %v504
    %514 = vst [vmem:[%s512 + $0x8] sm:$0xff] %v505
    %515 = vst [vmem:[%s512 + $0x10] sm:$0xff] %v506
    %516 = vst [vmem:[%s512 + $0x18] sm:$0xff] %v507
    %517 = vst [vmem:[%s512 + $0x20] sm:$0xff] %v508
    %518 = vst [vmem:[%s512 + $0x28] sm:$0xff] %v509
    %519 = vst [vmem:[%s512 + $0x30] sm:$0xff] %v510
    %520 = vst [vmem:[%s512 + $0x38] sm:$0xff] %v511
    // Predicated region
    $region18: #{tpu_custom_call.1} parent=1 // pred_check
      _
    $region19: #{tpu_custom_call.1} parent=1 // pred_check_branch
      %522 = sbr.rel (0) target = $region21
    $region20: #{tpu_custom_call.1} parent=1 // pred_region
      %s524 = ssub.s32 2048, 2048
      %525 = vsyncadd [#allocation4], %s524
      %s526 = sshll.u32 [#allocation3], 4
      %s527 = int_to_ptr.vmem [resolvable:$true] %s526
      %532 = dma.vmem_to_hbm [thread:$0]  %s527, 2048, %s4, [#allocation4], 256, 256, 16
    $region21: #{tpu_custom_call.1} parent=1 // pred_fallthru
      _
    // Predicated region
    $region22: #{tpu_custom_call.1} parent=1 // pred_check
      _
    $region23: #{tpu_custom_call.1} parent=1 // pred_check_branch
      %534 = sbr.rel (0) target = $region25
    $region24: #{tpu_custom_call.1} parent=1 // pred_region
      %535 = dma.done [#allocation4], 2048
    $region25: #{tpu_custom_call.1} parent=1 // pred_fallthru
      _
    %536 = vsyncpa [#allocation4], 1

</llo_original>
